<compile_context>
chip_gen: v5e
topology: v5e:2x2
jax: 0.10.0
libtpu: 0.0.40
codegen_flags: <defaults>
</compile_context>

<pallas_src>
import functools

import jax
import jax.numpy as jnp
from jax.experimental import pallas as pl
from jax.experimental.pallas import tpu as pltpu


def _round_up(x, m):
    return ((x + m - 1) // m) * m


# ----------------------------------------------------------------------------
# Kernel 1: pooled statistic (std_pool2d / avg_pool2d), streamed from NCHW.
# ----------------------------------------------------------------------------
def _pool_kernel(bsize, wb, use_std, x_ref, out_ref):
    # x_ref:  [T, bsize, W]  -- T row-strips, each bsize rows x W columns.
    # out_ref:[T, wb]        -- one pooled value per bsize x bsize window.
    w = x_ref.shape[-1]
    inv = 1.0 / float(bsize * bsize)

    # 0/1 pooling matrices built from iotas (multiply + compare only):
    #   pool[c, j]   = 1 iff column c belongs to window j        [w, wb]
    #   pool_t[j, c] = 1 iff column c belongs to window j        [wb, w]
    col = jax.lax.broadcasted_iota(jnp.int32, (w, wb), 0)
    win = jax.lax.broadcasted_iota(jnp.int32, (w, wb), 1) * bsize
    pool = ((col >= win) & (col < win + bsize)).astype(jnp.float32)
    col_t = jax.lax.broadcasted_iota(jnp.int32, (wb, w), 1)
    win_t = jax.lax.broadcasted_iota(jnp.int32, (wb, w), 0) * bsize
    pool_t = ((col_t >= win_t) & (col_t < win_t + bsize)).astype(jnp.float32)

    hi = jax.lax.Precision.HIGHEST  # keep the f32 pooling sums exact on the MXU

    # Window means: sublane reduce over the bsize rows, then a pooling matmul
    # over the bsize columns of each window.
    row_sum = jnp.sum(x_ref[...].astype(jnp.float32), axis=1)            # [T, w]
    mean_w = jnp.dot(row_sum, pool, precision=hi,
                     preferred_element_type=jnp.float32) * inv           # [T, wb]

    if use_std:
        # Faithful two-pass variance (mean -> nearest-upsample -> (x-m)^2 ->
        # avg-pool), avoiding the E[x^2]-E[x]^2 cancellation path.  The block
        # is re-read from VMEM for the second pass (cheap; HBM is read once).
        mean_up = jnp.dot(mean_w, pool_t, precision=hi,
                          preferred_element_type=jnp.float32)            # [T, w]
        d = x_ref[...].astype(jnp.float32) - mean_up[:, None, :]         # [T,b,w]
        d2_row = jnp.sum(d * d, axis=1)                                  # [T, w]
        out_ref[...] = jnp.dot(d2_row, pool, precision=hi,
                               preferred_element_type=jnp.float32) * inv
    else:
        out_ref[...] = mean_w


# ----------------------------------------------------------------------------
# Kernel 2: numerically-stable softmax + clamp + uniform-target cross-entropy.
# ----------------------------------------------------------------------------
def _softmax_ce_kernel(n_elements, v_ref, out_ref):
    v = v_ref[...].astype(jnp.float32)                    # [B, n_elements]
    m = jnp.max(v, axis=1, keepdims=True)                 # stable softmax
    e = jnp.exp(v - m)
    z = jnp.sum(e, axis=1, keepdims=True)
    p = e / z
    p = jnp.clip(p, 1e-12, 1.0 - 1e-12)                   # torch.clamp(pred, eps, 1-eps)
    denom = jnp.float32(n_elements * v.shape[0])          # (1/n) * sum / batch
    out_ref[...] = (-jnp.sum(jnp.log(p + 1e-9)) / denom).reshape(1, 1)


# ----------------------------------------------------------------------------
# Generation-aware tiling / VMEM budgeting
# ----------------------------------------------------------------------------
def _vmem_limit_bytes():
    """One consistent scoped-VMEM budget derived from the chip's capacity."""
    phys = None
    try:
        info = pltpu.get_tpu_info()
        for name in ("vmem_capacity_bytes", "vmem_size_bytes", "vmem_bytes"):
            phys = getattr(info, name, None)
            if phys:
                break
    except Exception:
        phys = None
    if not phys:
        phys = 64 * 1024 * 1024          # conservative default: v7x per-core VMEM
    # v5e/v6e (128 MiB) -> 64 MiB scoped; v7x (64 MiB) -> 32 MiB scoped.
    return int(min(phys // 2, 64 * 1024 * 1024))


def _pick_tile(n_strips, bsize, w, wb, in_itemsize, vmem_limit):
    """Strip-rows per block: multiple of 8, >=2 grid steps, VMEM-bounded."""
    if n_strips <= 8:
        return n_strips
    strip_bytes = bsize * w * in_itemsize                 # useful HBM bytes/strip
    # Padded VMEM footprint per strip: double-buffered input + output blocks
    # plus ~2 block-sized f32 temporaries around the pooling matmuls.
    strip_vmem = (2 * max(bsize, 8) * _round_up(w, 128) * in_itemsize
                  + 2 * bsize * _round_up(w, 128) * 4
                  + 2 * _round_up(wb, 128) * 4)
    total = n_strips * strip_bytes
    # Aim for ~8 grid steps but keep blocks in [1 MiB, 8 MiB] to amortize the
    # ~0.35us/step pipeline overhead without starving VMEM.
    target = min(max(total // 8, 1 << 20), 8 << 20)
    tile = max(8, (target // strip_bytes) // 8 * 8)
    # Same budget as vmem_limit_bytes, with headroom for compiler scratch.
    budget = (vmem_limit * 3) // 4
    tile = min(tile, max(8, (budget // strip_vmem) // 8 * 8))
    # Always leave >=2 grid steps so both v7x TensorCores get work.
    tile = min(tile, _round_up(pl.cdiv(n_strips, 2), 8))
    return max(tile, 8)


# ----------------------------------------------------------------------------
# Wrapper
# ----------------------------------------------------------------------------
@functools.partial(jax.jit, static_argnames=("stat", "bsize"))
def stationary_loss(x, stat="std", bsize=4):
    if stat not in ("std", "mean"):
        raise ValueError(f"unsupported stat: {stat}")
    B, C, H, W = x.shape
    # TODO(synk): replicate avg_pool2d truncation + nearest-interpolate
    # semantics when H or W is not a multiple of bsize.
    assert H % bsize == 0 and W % bsize == 0
    hb, wb = H // bsize, W // bsize
    n_strips = B * C * hb          # one strip = bsize consecutive image rows
    n_blocks = C * hb * wb         # pooled elements per batch row

    # Copy-free view of NCHW (contiguous dim splits only -- no transpose, so
    # kernel 1 reads x from HBM exactly once).
    xs = x.reshape(n_strips, bsize, W)

    vmem_limit = _vmem_limit_bytes()
    tile = _pick_tile(n_strips, bsize, W, wb, x.dtype.itemsize, vmem_limit)

    pooled = pl.pallas_call(
        functools.partial(_pool_kernel, bsize, wb, stat == "std"),
        out_shape=jax.ShapeDtypeStruct((n_strips, wb), jnp.float32),
        grid_spec=pltpu.PrefetchScalarGridSpec(
            num_scalar_prefetch=0,
            grid=(pl.cdiv(n_strips, tile),),
            in_specs=[pl.BlockSpec((tile, bsize, W), lambda i: (i, 0, 0))],
            out_specs=pl.BlockSpec((tile, wb), lambda i: (i, 0)),
        ),
        compiler_params=pltpu.CompilerParams(
            dimension_semantics=("parallel",),
            vmem_limit_bytes=vmem_limit,
        ),
    )(xs)

    # Row-major (strip, window) order == torch's .view(B, -1) flatten order,
    # and this reshape is again a contiguous split/merge (free under jit).
    means = pooled.reshape(B, n_blocks)

    # TODO(synk): for very large B*n_blocks, tile this epilogue as a two-pass
    # online softmax (and/or single-buffer its input via pl.Buffered(1)); at
    # x.size/16 it fits comfortably in VMEM for typical CNN activations.
    loss = pl.pallas_call(
        functools.partial(_softmax_ce_kernel, n_blocks),
        out_shape=jax.ShapeDtypeStruct((1, 1), jnp.float32),
        grid_spec=pltpu.PrefetchScalarGridSpec(
            num_scalar_prefetch=0,
            grid=(1,),
            in_specs=[pl.BlockSpec((B, n_blocks), lambda i: (0, 0))],
            out_specs=pl.BlockSpec((1, 1), lambda i: (0, 0)),
        ),
        compiler_params=pltpu.CompilerParams(
            dimension_semantics=("arbitrary",),
            vmem_limit_bytes=vmem_limit,
        ),
    )(means)
    return loss[0, 0]


# ----------------------------------------------------------------------------
# Pure-JAX reference (mirrors the PyTorch module)
# ----------------------------------------------------------------------------
def _reference(x, stat="std", bsize=4):
    B, C, H, W = x.shape
    hb, wb = H // bsize, W // bsize
    xf = x.astype(jnp.float32)
    xr = xf.reshape(B, C, hb, bsize, wb, bsize)
    mean = xr.mean(axis=(3, 5))                              # avg_pool2d
    if stat == "std":
        mu = jnp.repeat(jnp.repeat(mean, bsize, axis=2), bsize, axis=3)
        d2 = (xf - mu) ** 2
        stat_map = d2.reshape(B, C, hb, bsize, wb, bsize).mean(axis=(3, 5))
    else:
        stat_map = mean
    v = stat_map.reshape(B, -1)
    n = v.shape[1]
    p = jax.nn.softmax(v, axis=1)
    p = jnp.clip(p, 1e-12, 1.0 - 1e-12)
    return -jnp.sum(jnp.log(p + 1e-9)) / (n * B)


if __name__ == "__main__":
    key = jax.random.PRNGKey(0)
    x = jax.random.normal(key, (2, 4, 16, 16), dtype=jnp.float32)   # NCHW

    loss = stationary_loss(x, stat="std")
    loss = jax.block_until_ready(loss)

    ref = _reference(x, stat="std")
    # Typical error is ~1e-6 (all-f32, HIGHEST-precision pooling matmuls).
    assert abs(float(loss) - float(ref)) < 2e-3, (float(loss), float(ref))
    print("KERNEL_OK")
</pallas_src>

<mosaic_0001>
module attributes {stable_mosaic.version = 11 : i64} {
  func.func @_softmax_ce_kernel(%arg0: i32, %arg1: memref<2x64xf32, #tpu.memory_space<vmem>>, %arg2: memref<1x1xf32, #tpu.memory_space<vmem>>) attributes {dimension_semantics = [#tpu.dimension_semantics<arbitrary>], iteration_bounds = array<i64: 1>, scalar_prefetch = 0 : i64, scratch_operands = 0 : i64, tpu.core_type = #tpu.core_type<tc>, window_params = [{pipeline_mode = #tpu.pipeline_mode<synchronous>, transform_indices = @transform_0, window_bounds = array<i64: 2, 64>}, {pipeline_mode = #tpu.pipeline_mode<synchronous>, transform_indices = @transform_1, window_bounds = array<i64: 1, 1>}]} {
    %c0 = arith.constant 0 : index
    %c0_0 = arith.constant 0 : index
    %0 = vector.load %arg1[%c0, %c0_0] : memref<2x64xf32, #tpu.memory_space<vmem>>, vector<2x64xf32>
    %cst = arith.constant dense<0xFF800000> : vector<2xf32>
    %1 = vector.multi_reduction <maximumf>, %0, %cst [1] : vector<2x64xf32> to vector<2xf32>
    %2 = vector.shape_cast %1 : vector<2xf32> to vector<2x1xf32>
    %3 = vector.broadcast %2 : vector<2x1xf32> to vector<2x64xf32>
    %4 = arith.subf %0, %3 : vector<2x64xf32>
    %5 = math.exp %4 : vector<2x64xf32>
    %cst_1 = arith.constant dense<0.000000e+00> : vector<2xf32>
    %6 = vector.multi_reduction <add>, %5, %cst_1 [1] : vector<2x64xf32> to vector<2xf32>
    %7 = vector.shape_cast %6 : vector<2xf32> to vector<2x1xf32>
    %8 = vector.broadcast %7 : vector<2x1xf32> to vector<2x64xf32>
    %9 = arith.divf %5, %8 : vector<2x64xf32>
    %cst_2 = arith.constant 9.99999996E-13 : f32
    %cst_3 = arith.constant 1.000000e+00 : f32
    %10 = vector.broadcast %cst_2 : f32 to vector<2x64xf32>
    %11 = arith.maximumf %10, %9 : vector<2x64xf32>
    %12 = vector.broadcast %cst_3 : f32 to vector<2x64xf32>
    %13 = arith.minimumf %12, %11 : vector<2x64xf32>
    %cst_4 = arith.constant 9.99999971E-10 : f32
    %14 = vector.broadcast %cst_4 : f32 to vector<2x64xf32>
    %15 = arith.addf %13, %14 : vector<2x64xf32>
    %16 = math.log %15 : vector<2x64xf32>
    %17 = vector.shape_cast %16 : vector<2x64xf32> to vector<1x2x64xf32>
    %cst_5 = arith.constant dense<0.000000e+00> : vector<1xf32>
    %18 = vector.multi_reduction <add>, %17, %cst_5 [1, 2] : vector<1x2x64xf32> to vector<1xf32>
    %19 = vector.shape_cast %18 : vector<1xf32> to vector<1x1x1xf32>
    %20 = vector.extract %19[0, 0, 0] : f32 from vector<1x1x1xf32>
    %cst_6 = arith.constant 0.000000e+00 : f32
    %21 = arith.subf %cst_6, %20 : f32
    %cst_7 = arith.constant 1.280000e+02 : f32
    %22 = arith.divf %21, %cst_7 : f32
    %23 = vector.broadcast %22 : f32 to vector<1x1xf32>
    %c0_8 = arith.constant 0 : index
    %c0_9 = arith.constant 0 : index
    %24 = vector.load %arg2[%c0_8, %c0_9] : memref<1x1xf32, #tpu.memory_space<vmem>>, vector<1x1xf32>
    tpu.vector_store %arg2[%c0_8, %c0_9], %23 {strides = array<i32>} : memref<1x1xf32, #tpu.memory_space<vmem>>, vector<1x1xf32>,
    return
  }
  func.func @transform_0(%arg0: i32) -> (i32, i32) {
    %c0_i32 = arith.constant 0 : i32
    %c0_i32_0 = arith.constant 0 : i32
    %c0_i32_1 = arith.constant 0 : i32
    return %c0_i32, %c0_i32_0 : i32, i32
  }
  func.func @transform_1(%arg0: i32) -> (i32, i32) {
    %c0_i32 = arith.constant 0 : i32
    %c0_i32_0 = arith.constant 0 : i32
    %c0_i32_1 = arith.constant 0 : i32
    return %c0_i32, %c0_i32_0 : i32, i32
  }
}

module attributes {stable_mosaic.version = 11 : i64} {
  func.func @_pool_kernel(%arg0: i32, %arg1: memref<16x4x16xf32, #tpu.memory_space<vmem>>, %arg2: memref<16x4xf32, #tpu.memory_space<vmem>>) attributes {dimension_semantics = [#tpu.dimension_semantics<parallel>], iteration_bounds = array<i64: 2>, scalar_prefetch = 0 : i64, scratch_operands = 0 : i64, tpu.core_type = #tpu.core_type<tc>, window_params = [{transform_indices = @transform_0, window_bounds = array<i64: 16, 4, 16>}, {transform_indices = @transform_1, window_bounds = array<i64: 16, 4>}]} {
    %0 = tpu.iota {dimensions = array<i32: 0>} : vector<16x4xi32>
    %1 = tpu.iota {dimensions = array<i32: 1>} : vector<16x4xi32>
    %c4_i32 = arith.constant 4 : i32
    %2 = vector.broadcast %c4_i32 : i32 to vector<16x4xi32>
    %3 = arith.muli %1, %2 : vector<16x4xi32>
    %4 = arith.cmpi sge, %0, %3 : vector<16x4xi32>
    %c4_i32_0 = arith.constant 4 : i32
    %5 = vector.broadcast %c4_i32_0 : i32 to vector<16x4xi32>
    %6 = arith.addi %3, %5 : vector<16x4xi32>
    %7 = arith.cmpi slt, %0, %6 : vector<16x4xi32>
    %8 = arith.andi %4, %7 : vector<16x4xi1>
    %9 = arith.extui %8 : vector<16x4xi1> to vector<16x4xi32>
    %10 = arith.sitofp %9 : vector<16x4xi32> to vector<16x4xf32>
    %11 = tpu.iota {dimensions = array<i32: 1>} : vector<4x16xi32>
    %12 = tpu.iota {dimensions = array<i32: 0>} : vector<4x16xi32>
    %c4_i32_1 = arith.constant 4 : i32
    %13 = vector.broadcast %c4_i32_1 : i32 to vector<4x16xi32>
    %14 = arith.muli %12, %13 : vector<4x16xi32>
    %15 = arith.cmpi sge, %11, %14 : vector<4x16xi32>
    %c4_i32_2 = arith.constant 4 : i32
    %16 = vector.broadcast %c4_i32_2 : i32 to vector<4x16xi32>
    %17 = arith.addi %14, %16 : vector<4x16xi32>
    %18 = arith.cmpi slt, %11, %17 : vector<4x16xi32>
    %19 = arith.andi %15, %18 : vector<4x16xi1>
    %20 = arith.extui %19 : vector<4x16xi1> to vector<4x16xi32>
    %21 = arith.sitofp %20 : vector<4x16xi32> to vector<4x16xf32>
    %c0 = arith.constant 0 : index
    %c0_3 = arith.constant 0 : index
    %c0_4 = arith.constant 0 : index
    %22 = vector.load %arg1[%c0, %c0_3, %c0_4] : memref<16x4x16xf32, #tpu.memory_space<vmem>>, vector<16x4x16xf32>
    %cst = arith.constant dense<0.000000e+00> : vector<16x16xf32>
    %23 = vector.multi_reduction <add>, %22, %cst [1] : vector<16x4x16xf32> to vector<16x16xf32>
    %cst_5 = arith.constant dense<0.000000e+00> : vector<16x4xf32>
    %24 = tpu.matmul %23, %10, %cst_5 {dimension_numbers = #tpu.dot_dimension_numbers<[1], [0], [0], [1], [0, 0, 1, 1], [], []>, precision = #tpu.contract_precision<fp32>} : vector<16x16xf32>, vector<16x4xf32>, vector<16x4xf32> -> vector<16x4xf32>
    %cst_6 = arith.constant 6.250000e-02 : f32
    %25 = vector.broadcast %cst_6 : f32 to vector<16x4xf32>
    %26 = arith.mulf %24, %25 : vector<16x4xf32>
    %cst_7 = arith.constant dense<0.000000e+00> : vector<16x16xf32>
    %27 = tpu.matmul %26, %21, %cst_7 {dimension_numbers = #tpu.dot_dimension_numbers<[1], [0], [0], [1], [0, 0, 1, 1], [], []>, precision = #tpu.contract_precision<fp32>} : vector<16x4xf32>, vector<4x16xf32>, vector<16x16xf32> -> vector<16x16xf32>
    %c0_8 = arith.constant 0 : index
    %c0_9 = arith.constant 0 : index
    %c0_10 = arith.constant 0 : index
    %28 = vector.load %arg1[%c0_8, %c0_9, %c0_10] : memref<16x4x16xf32, #tpu.memory_space<vmem>>, vector<16x4x16xf32>
    %29 = vector.shape_cast %27 : vector<16x16xf32> to vector<16x1x16xf32>
    %30 = vector.broadcast %29 : vector<16x1x16xf32> to vector<16x4x16xf32>
    %31 = arith.subf %28, %30 : vector<16x4x16xf32>
    %32 = arith.mulf %31, %31 : vector<16x4x16xf32>
    %cst_11 = arith.constant dense<0.000000e+00> : vector<16x16xf32>
    %33 = vector.multi_reduction <add>, %32, %cst_11 [1] : vector<16x4x16xf32> to vector<16x16xf32>
    %cst_12 = arith.constant dense<0.000000e+00> : vector<16x4xf32>
    %34 = tpu.matmul %33, %10, %cst_12 {dimension_numbers = #tpu.dot_dimension_numbers<[1], [0], [0], [1], [0, 0, 1, 1], [], []>, precision = #tpu.contract_precision<fp32>} : vector<16x16xf32>, vector<16x4xf32>, vector<16x4xf32> -> vector<16x4xf32>
    %cst_13 = arith.constant 6.250000e-02 : f32
    %35 = vector.broadcast %cst_13 : f32 to vector<16x4xf32>
    %36 = arith.mulf %34, %35 : vector<16x4xf32>
    %c0_14 = arith.constant 0 : index
    %c0_15 = arith.constant 0 : index
    %37 = vector.load %arg2[%c0_14, %c0_15] : memref<16x4xf32, #tpu.memory_space<vmem>>, vector<16x4xf32>
    tpu.vector_store %arg2[%c0_14, %c0_15], %36 {strides = array<i32>} : memref<16x4xf32, #tpu.memory_space<vmem>>, vector<16x4xf32>,
    return
  }
  func.func @transform_0(%arg0: i32) -> (i32, i32, i32) {
    %c0_i32 = arith.constant 0 : i32
    %c0_i32_0 = arith.constant 0 : i32
    %c0_i32_1 = arith.constant 0 : i32
    return %arg0, %c0_i32, %c0_i32_0 : i32, i32, i32
  }
  func.func @transform_1(%arg0: i32) -> (i32, i32) {
    %c0_i32 = arith.constant 0 : i32
    %c0_i32_0 = arith.constant 0 : i32
    return %arg0, %c0_i32 : i32, i32
  }
}

</mosaic_0001>

<llo_original>
// kernel: stationary_loss.3
$region0: #{stationary_loss.3}
  #allocation0 [shape = 'u32[]', space=smem, size = 0x4, offset = 0x4, fixed_abs, tag = 'smem constant byte address 0x4 - core index']
  #allocation1 [shape = 'u32[72,128]{1,0:T(1,128)}', space=vmem, size = 0x9000, scoped, tag = 'internal scratch']
  %s0 = inlined_call_operand.vmem [shape: f32[2,64], index: 0, kind: input, shape index: {}]
  %s1 = inlined_call_operand.hbm [shape: f32[1,1], index: 1, kind: output, shape index: {}]
  %s2 = sld [smem:[#allocation0]]
  $region14: #{stationary_loss.3} parent=0
    _
  %s4 = ssub.s32 1, %s2
  %s5 = scalar_select 0, %s4, %s2
  $region1: #{stationary_loss.3} parent=0
    #allocation2 [shape = 'u8[512]{0}', space=vmem, size = 0x400, scoped, tag = 'output window, operand 0, single buffered']
    #allocation3 [shape = 's32[1]{0}', space=sflag, size = 0x4, scoped, tag = 'scoped memory for stationary_loss.3']
    %6 = vsyncpa [#allocation3], 0
    // Predicated region
    $region2: #{stationary_loss.3} parent=1 // pred_check
      _
    $region3: #{stationary_loss.3} parent=1 // pred_check_branch
      %8 = sbr.rel (0) target = $region5
    $region4: #{stationary_loss.3} parent=1 // pred_region
      _
    $region5: #{stationary_loss.3} parent=1 // pred_fallthru
      _
    %v9 = vld [vmem:[%s0] sm:$0x3]
    %vm10 = vcmask 517120
    %v11 = vsel %vm10, %v9, -inf
    %12 = vmax.xlane.f32.xlu0 %v11
    %v13 = vpop.xlane.xlu0 %12
    %v14 = vsub.f32 %v9, %v13
    %v15 = vmul.f32 %v14, 1.442695
    %v16 = vpow.pop %v15
    %v17 = vsel %vm10, %v16, 0.0
    %18 = vadd.xlane.f32.xlu0 %v17
    %v19 = vpop.xlane.xlu0 %18
    %v20 = vrcp.pop %v19
    %v21 = vmul.f32 %v19, %v20
    %v22 = vsub.f32 1.0, %v21
    %v23 = vmul.f32 %v20, %v22
    %v24 = vadd.f32 %v20, %v23
    %vm25 = vweird.f32 %v19
    %vm26 = vweird.f32 %v20
    %vm27 = vmor %vm25, %vm26
    %v28 = vsel %vm27, %v20, %v24
    %v29 = vand.u32 2147483647, %v19
    %vm30 = vcmp.eq.f32.partialorder %v29, 8.507059e+37
    %v31 = vand.u32 %v19, 2147483648
    %v32 = vor.u32 1.1754944e-38, %v31
    %v33 = vsel %vm30, %v32, %v28
    %v34 = vmul.f32 %v16, %v33
    %v35 = vmax.f32 %v34, 1e-12
    %v36 = vmin.f32 %v35, 1.0
    %v37 = vadd.f32 %v36, 1e-09
    %v38 = vlog2.pop %v37
    %v39 = vmul.f32 %v38, 0.6931472
    %v40 = vsel %vm10, %v39, 0.0
    %41 = vadd.xlane.f32.xlu0 %v40
    %v42 = vpop.xlane.xlu0 %41
    %v43 = vrot.slane %v42, 4
    %v44 = vadd.f32 %v42, %v43
    %v45 = vrot.slane %v44, 2
    %v46 = vadd.f32 %v44, %v45
    %v47 = vrot.slane %v46, 1
    %v48 = vadd.f32 %v46, %v47
    %s49 = vtos %v48
    %s50 = ssub.f32 0.0, %s49
    %v51 = vrcp.pop 128.0
    %v52 = vmul.f32 128.0, %v51
    %v53 = vsub.f32 1.0, %v52
    %v54 = vmul.f32 %v51, %v53
    %v55 = vadd.f32 %v51, %v54
    %vm56 = vweird.f32 %v51
    %v57 = vsel %vm56, %v51, %v55
    %s58 = vtos %v57
    %s59 = smul.f32 %s50, %s58
    %v60 = vstv %s59
    %vm61 = vcmask 0
    %62 = vst.msk [vmem:[#allocation2] sm:$0x1] %vm61, %v60
    // Predicated region
    $region6: #{stationary_loss.3} parent=1 // pred_check
      _
    $region7: #{stationary_loss.3} parent=1 // pred_check_branch
      %64 = sbr.rel (0) target = $region9
    $region8: #{stationary_loss.3} parent=1 // pred_region
      %66 = vsyncadd [#allocation3], 0
      %s68 = sshll.u32 [#allocation2], 4
      %s69 = int_to_ptr.vmem [resolvable:$true] %s68
      %s70 = sshll.u32 %s1, 4
      %s71 = int_to_ptr.hbm [resolvable:$true] %s70
      %73 = dma.vmem_to_hbm [thread:$0]  %s69, 16, %s71, [#allocation3]
    $region9: #{stationary_loss.3} parent=1 // pred_fallthru
      _
    // Predicated region
    $region10: #{stationary_loss.3} parent=1 // pred_check
      _
    $region11: #{stationary_loss.3} parent=1 // pred_check_branch
      %75 = sbr.rel (0) target = $region13
    $region12: #{stationary_loss.3} parent=1 // pred_region
      %77 = dma.done [#allocation3], 16
    $region13: #{stationary_loss.3} parent=1 // pred_fallthru
      _
    %78 = vsyncpa [#allocation3], 1

// kernel: stationary_loss.2
$region0: #{stationary_loss.2}
  #allocation0 [shape = 'u32[]', space=smem, size = 0x4, offset = 0x4, fixed_abs, tag = 'smem constant byte address 0x4 - core index']
  #allocation1 [shape = 'u32[72,128]{1,0:T(1,128)}', space=vmem, size = 0x9000, scoped, tag = 'internal scratch']
  %s0 = inlined_call_operand.hbm [shape: f32[32,4,16], index: 0, kind: input, shape index: {}]
  %s1 = inlined_call_operand.vmem [shape: f32[32,4], index: 1, kind: output, shape index: {}]
  %s2 = sld [smem:[#allocation0]]
  $region41: #{stationary_loss.2} parent=0
    _
  %s4 = ssub.s32 1, %s2
  %s5 = scalar_select 0, %s4, %s2
  $region1: #{stationary_loss.2} parent=0
    #allocation2 [shape = 'u8[65536]{0}', space=vmem, size = 0x10000, scoped, tag = 'input window, operand 0']
    #allocation3 [shape = 's32[2]{0}', space=sflag, size = 0x8, scoped, tag = 'scoped memory for stationary_loss.2']
    %6 = vsyncpa [#allocation3], 0
    %s7 = scalar_lea.sflag [#allocation3], 1
    %8 = vsyncpa %s7, 0
    loop: start=0, step=1, limit=4
    $region2: #{stationary_loss.2} parent=1 // loop_pre_header
      _
    $region3: #{stationary_loss.2} parent=1 // loop_header
      %s10 = sphi 0, %s14
      %p11 = scmp.ge.s32.totalorder %s10, 4
      %s20 = sphi 0, %s22
      %s23 = sphi 0, %s20
      %s24 = sphi 0, %s23
      %s40 = sphi 0, %s24
      %s46 = sphi 0, %s48
      %s49 = sphi 0, %s46
      %s50 = sphi 0, %s49
      %s66 = sphi 0, %s50
    $region4: #{stationary_loss.2} parent=1 // loop_header_branch
      %13 = sbr.rel (%p11) target = $region8
    $region5: #{stationary_loss.2} parent=1 // loop_body
      %s15 = ssub.s32 %s10, 1
      %s16 = ssub.s32 %s10, 2
      %s17 = sadd.s32 %s10, 1
      %s18 = ssub.s32 %s10, %s17
      %p19 = scmp.eq.s32.totalorder %s18, 0
      %s21 = sadd.s32 %s20, 1
      %s22 = scalar_select %p19, %s20, %s21
      %p25 = pneg %p19
      %p26 = scmp.eq.s32.totalorder %s10, 1
      %p27 = por %p25, %p26
      %p28 = scmp.ne.s32.totalorder %s20, %s23
      %p29 = scmp.eq.s32.totalorder %s10, 0
      %p30 = por %p28, %p29
      %p31 = scmp.ne.s32.totalorder %s20, %s23
      %p32 = scmp.eq.s32.totalorder %s15, 1
      %p33 = por %p31, %p32
      %p34 = scmp.ne.s32.totalorder %s23, %s24
      %p35 = scmp.eq.s32.totalorder %s15, 0
      %p36 = por %p34, %p35
      %p37 = scmp.ne.s32.totalorder %s23, %s24
      %p38 = scmp.eq.s32.totalorder %s16, 1
      %p39 = por %p37, %p38
      %p41 = scmp.ne.s32.totalorder %s24, %s40
      %p42 = scmp.eq.s32.totalorder %s16, 0
      %p43 = por %p41, %p42
      %s44 = ssub.s32 %s10, %s17
      %p45 = scmp.eq.s32.totalorder %s44, 0
      %s47 = sadd.s32 %s46, 1
      %s48 = scalar_select %p45, %s46, %s47
      %p51 = pneg %p45
      %p52 = scmp.eq.s32.totalorder %s10, 1
      %p53 = por %p51, %p52
      %p54 = scmp.ne.s32.totalorder %s46, %s49
      %p55 = scmp.eq.s32.totalorder %s10, 0
      %p56 = por %p54, %p55
      %p57 = scmp.ne.s32.totalorder %s46, %s49
      %p58 = scmp.eq.s32.totalorder %s15, 1
      %p59 = por %p57, %p58
      %p60 = scmp.ne.s32.totalorder %s49, %s50
      %p61 = scmp.eq.s32.totalorder %s15, 0
      %p62 = por %p60, %p61
      %p63 = scmp.ne.s32.totalorder %s49, %s50
      %p64 = scmp.eq.s32.totalorder %s16, 1
      %p65 = por %p63, %p64
      %p67 = scmp.ne.s32.totalorder %s50, %s66
      %p68 = scmp.eq.s32.totalorder %s16, 0
      %p69 = por %p67, %p68
      %p70 = scmp.le.s32.totalorder 1, %s10
      %p71 = scmp.lt.s32.totalorder %s10, 3
      %p72 = pnand %p70, %p71
      %p73 = pneg %p72
      // Predicated region
      $region9: #{stationary_loss.2} parent=5 // pred_check
        _
      $region10: #{stationary_loss.2} parent=5 // pred_check_branch
        %75 = sbr.rel (%p72) target = $region12
      $region11: #{stationary_loss.2} parent=5 // pred_region
        %s76 = ssub.s32 %s10, 1
      $region12: #{stationary_loss.2} parent=5 // pred_fallthru
        _
      %p77 = scmp.lt.s32.totalorder %s10, 2
      // Predicated region
      $region13: #{stationary_loss.2} parent=5 // pred_check
        %p78 = pneg %p77
      $region14: #{stationary_loss.2} parent=5 // pred_check_branch
        %80 = sbr.rel (%p78) target = $region16
      $region15: #{stationary_loss.2} parent=5 // pred_region
        // Predicated region
        $region17: #{stationary_loss.2} parent=15 // pred_check
          %p81 = pneg %p30
        $region18: #{stationary_loss.2} parent=15 // pred_check_branch
          %83 = sbr.rel (%p81) target = $region20
        $region19: #{stationary_loss.2} parent=15 // pred_region
          %s84 = sand.u32 %s20, 1
          %s85 = scalar_lea.sflag [#allocation3], %s84
          %s86 = sand.u32 %s20, 1
          %s87 = smul.addr %s86, 64
          %s88 = scalar_lea.vmem [#allocation2], %s87
          %s89 = smul.u32 16, %s10
          %91 = vsyncadd %s85, 0
          %s92 = smul.addr %s89, 4
          %s93 = scalar_lea.hbm %s0, %s92
          %s94 = sshll.u32 %s93, 4
          %s95 = int_to_ptr.hbm [resolvable:$true] %s94
          %s96 = sshll.u32 %s88, 4
          %s97 = int_to_ptr.vmem [resolvable:$true] %s96
          %102 = dma.hbm_to_vmem [thread:$0]  %s95, 1024, %s97, %s85, 64, 64, 4
        $region20: #{stationary_loss.2} parent=15 // pred_fallthru
          _
      $region16: #{stationary_loss.2} parent=5 // pred_fallthru
        _
      %p103 = scmp.le.s32.totalorder 1, %s10
      %p104 = scmp.lt.s32.totalorder %s10, 3
      %p105 = pnand %p103, %p104
      %p106 = pneg %p105
      // Predicated region
      $region21: #{stationary_loss.2} parent=5 // pred_check
        _
      $region22: #{stationary_loss.2} parent=5 // pred_check_branch
        %108 = sbr.rel (%p105) target = $region24
      $region23: #{stationary_loss.2} parent=5 // pred_region
        %s109 = ssub.s32 %s10, 1
        %s110 = sand.u32 %s23, 1
        %s111 = scalar_lea.sflag [#allocation3], %s110
        %s112 = sand.u32 %s23, 1
        %s113 = smul.addr %s112, 64
        %s114 = scalar_lea.vmem [#allocation2], %s113
        // Predicated region
        $region25: #{stationary_loss.2} parent=23 // pred_check
          %p115 = pneg %p36
        $region26: #{stationary_loss.2} parent=23 // pred_check_branch
          %117 = sbr.rel (%p115) target = $region28
        $region27: #{stationary_loss.2} parent=23 // pred_region
          %119 = dma.done %s111, 1024
        $region28: #{stationary_loss.2} parent=23 // pred_fallthru
          _
        %s120 = sand.u32 %s23, 1
        %s121 = scalar_lea.sflag [#allocation3], %s120
        %s122 = sand.u32 %s23, 1
        %s123 = smul.addr %s122, 64
        %s124 = scalar_lea.vmem [#allocation2], %s123
        %p125 = pneg %p36
        %p126 = pneg %p33
        %p127 = pneg %p62
        %p128 = pneg %p59
        %s129 = smul.u32 2, %s15
        %p130 = scmp.lt.s32.totalorder %s129, 3
        %s131 = scalar_select %p130, %s129, 3
        %s132 = smul.addr %s131, 8
        %s133 = scalar_lea.vmem %s1, %s132
        %s134 = smul.u32 16, %s15
        %s135 = smul.u32 2, %s15
        %p136 = scmp.lt.s32.totalorder %s135, 3
        %s137 = scalar_select %p136, %s135, 3
        %s138 = smul.addr %s137, 8
        %s139 = scalar_lea.vmem %s1, %s138
        %s140 = smul.u32 2, %s15
        %v141 = vlaneseq
        %v142 = vshrl.u32 %v141, 7
        %v143 = vadd.s32 %v142, 8
        %v144 = vlaneseq
        %v145 = vand.u32 %v144, 127
        %v146 = vmul.u32 %v145, 4
        %vm147 = vcmp.ge.s32.totalorder %v142, %v146
        %vm148 = vcmp.ge.s32.totalorder %v143, %v146
        %v149 = vadd.s32 %v146, 4
        %vm150 = vcmp.lt.s32.totalorder %v142, %v149
        %vm151 = vcmp.lt.s32.totalorder %v143, %v149
        %vm152 = vmand %vm147, %vm150
        %vm153 = vmand %vm148, %vm151
        %v154 = vsel %vm152, 1, 0
        %v155 = vsel %vm153, 1, 0
        %v156 = vcvt.s32.f32 %v154
        %v157 = vcvt.s32.f32 %v155
        %v158 = vmul.u32 %v142, 4
        %vm159 = vcmp.ge.s32.totalorder %v145, %v158
        %v160 = vadd.s32 %v158, 4
        %vm161 = vcmp.lt.s32.totalorder %v145, %v160
        %vm162 = vmand %vm159, %vm161
        %v163 = vsel %vm162, 1, 0
        %v164 = vcvt.s32.f32 %v163
        %v165 = vld [vmem:[%s114] sm:$0xf]
        %v166 = vld [vmem:[%s114 + $0x4] sm:$0xf]
        %v167 = vld [vmem:[%s114 + $0x8] sm:$0xf]
        %v168 = vld [vmem:[%s114 + $0xc] sm:$0xf]
        %v169 = vld [vmem:[%s114 + $0x10] sm:$0xf]
        %v170 = vld [vmem:[%s114 + $0x14] sm:$0xf]
        %v171 = vld [vmem:[%s114 + $0x18] sm:$0xf]
        %v172 = vld [vmem:[%s114 + $0x1c] sm:$0xf]
        %v173 = vld [vmem:[%s114 + $0x20] sm:$0xf]
        %v174 = vld [vmem:[%s114 + $0x24] sm:$0xf]
        %v175 = vld [vmem:[%s114 + $0x28] sm:$0xf]
        %v176 = vld [vmem:[%s114 + $0x2c] sm:$0xf]
        %v177 = vld [vmem:[%s114 + $0x30] sm:$0xf]
        %v178 = vld [vmem:[%s114 + $0x34] sm:$0xf]
        %v179 = vld [vmem:[%s114 + $0x38] sm:$0xf]
        %v180 = vld [vmem:[%s114 + $0x3c] sm:$0xf]
        %vm181 = vcmask 125952
        %v182 = vsel %vm181, %v165, 0.0
        %v183 = vrot.slane %v182, 4
        %v184 = vadd.f32 %v182, %v183
        %v185 = vrot.slane %v184, 2
        %v186 = vadd.f32 %v184, %v185
        %v187 = vrot.slane %v186, 1
        %v188 = vadd.f32 %v186, %v187
        %v189 = vsel %vm181, %v166, 0.0
        %v190 = vrot.slane %v189, 4
        %v191 = vadd.f32 %v189, %v190
        %v192 = vrot.slane %v191, 2
        %v193 = vadd.f32 %v191, %v192
        %v194 = vrot.slane %v193, 1
        %v195 = vadd.f32 %v193, %v194
        %v196 = vsel %vm181, %v167, 0.0
        %v197 = vrot.slane %v196, 4
        %v198 = vadd.f32 %v196, %v197
        %v199 = vrot.slane %v198, 2
        %v200 = vadd.f32 %v198, %v199
        %v201 = vrot.slane %v200, 1
        %v202 = vadd.f32 %v200, %v201
        %v203 = vsel %vm181, %v168, 0.0
        %v204 = vrot.slane %v203, 4
        %v205 = vadd.f32 %v203, %v204
        %v206 = vrot.slane %v205, 2
        %v207 = vadd.f32 %v205, %v206
        %v208 = vrot.slane %v207, 1
        %v209 = vadd.f32 %v207, %v208
        %v210 = vsel %vm181, %v169, 0.0
        %v211 = vrot.slane %v210, 4
        %v212 = vadd.f32 %v210, %v211
        %v213 = vrot.slane %v212, 2
        %v214 = vadd.f32 %v212, %v213
        %v215 = vrot.slane %v214, 1
        %v216 = vadd.f32 %v214, %v215
        %v217 = vsel %vm181, %v170, 0.0
        %v218 = vrot.slane %v217, 4
        %v219 = vadd.f32 %v217, %v218
        %v220 = vrot.slane %v219, 2
        %v221 = vadd.f32 %v219, %v220
        %v222 = vrot.slane %v221, 1
        %v223 = vadd.f32 %v221, %v222
        %v224 = vsel %vm181, %v171, 0.0
        %v225 = vrot.slane %v224, 4
        %v226 = vadd.f32 %v224, %v225
        %v227 = vrot.slane %v226, 2
        %v228 = vadd.f32 %v226, %v227
        %v229 = vrot.slane %v228, 1
        %v230 = vadd.f32 %v228, %v229
        %v231 = vsel %vm181, %v172, 0.0
        %v232 = vrot.slane %v231, 4
        %v233 = vadd.f32 %v231, %v232
        %v234 = vrot.slane %v233, 2
        %v235 = vadd.f32 %v233, %v234
        %v236 = vrot.slane %v235, 1
        %v237 = vadd.f32 %v235, %v236
        %v238 = vsel %vm181, %v173, 0.0
        %v239 = vrot.slane %v238, 4
        %v240 = vadd.f32 %v238, %v239
        %v241 = vrot.slane %v240, 2
        %v242 = vadd.f32 %v240, %v241
        %v243 = vrot.slane %v242, 1
        %v244 = vadd.f32 %v242, %v243
        %v245 = vsel %vm181, %v174, 0.0
        %v246 = vrot.slane %v245, 4
        %v247 = vadd.f32 %v245, %v246
        %v248 = vrot.slane %v247, 2
        %v249 = vadd.f32 %v247, %v248
        %v250 = vrot.slane %v249, 1
        %v251 = vadd.f32 %v249, %v250
        %v252 = vsel %vm181, %v175, 0.0
        %v253 = vrot.slane %v252, 4
        %v254 = vadd.f32 %v252, %v253
        %v255 = vrot.slane %v254, 2
        %v256 = vadd.f32 %v254, %v255
        %v257 = vrot.slane %v256, 1
        %v258 = vadd.f32 %v256, %v257
        %v259 = vsel %vm181, %v176, 0.0
        %v260 = vrot.slane %v259, 4
        %v261 = vadd.f32 %v259, %v260
        %v262 = vrot.slane %v261, 2
        %v263 = vadd.f32 %v261, %v262
        %v264 = vrot.slane %v263, 1
        %v265 = vadd.f32 %v263, %v264
        %v266 = vsel %vm181, %v177, 0.0
        %v267 = vrot.slane %v266, 4
        %v268 = vadd.f32 %v266, %v267
        %v269 = vrot.slane %v268, 2
        %v270 = vadd.f32 %v268, %v269
        %v271 = vrot.slane %v270, 1
        %v272 = vadd.f32 %v270, %v271
        %v273 = vsel %vm181, %v178, 0.0
        %v274 = vrot.slane %v273, 4
        %v275 = vadd.f32 %v273, %v274
        %v276 = vrot.slane %v275, 2
        %v277 = vadd.f32 %v275, %v276
        %v278 = vrot.slane %v277, 1
        %v279 = vadd.f32 %v277, %v278
        %v280 = vsel %vm181, %v179, 0.0
        %v281 = vrot.slane %v280, 4
        %v282 = vadd.f32 %v280, %v281
        %v283 = vrot.slane %v282, 2
        %v284 = vadd.f32 %v282, %v283
        %v285 = vrot.slane %v284, 1
        %v286 = vadd.f32 %v284, %v285
        %v287 = vsel %vm181, %v180, 0.0
        %v288 = vrot.slane %v287, 4
        %v289 = vadd.f32 %v287, %v288
        %v290 = vrot.slane %v289, 2
        %v291 = vadd.f32 %v289, %v290
        %v292 = vrot.slane %v291, 1
        %v293 = vadd.f32 %v291, %v292
        %vm310 = vcmask 1041409
        %v311 = vsel %vm310, %v195, %v188
        %vm312 = vcmask 1042434
        %v313 = vsel %vm312, %v202, %v311
        %vm314 = vcmask 1043459
        %v315 = vsel %vm314, %v209, %v313
        %vm316 = vcmask 1044484
        %v317 = vsel %vm316, %v216, %v315
        %vm318 = vcmask 1045509
        %v319 = vsel %vm318, %v223, %v317
        %vm320 = vcmask 1046534
        %v321 = vsel %vm320, %v230, %v319
        %vm322 = vcmask 1047559
        %v323 = vsel %vm322, %v237, %v321
        %v324 = vsel %vm310, %v251, %v244
        %v325 = vsel %vm312, %v258, %v324
        %v326 = vsel %vm314, %v265, %v325
        %v327 = vsel %vm316, %v272, %v326
        %v328 = vsel %vm318, %v279, %v327
        %v329 = vsel %vm320, %v286, %v328
        %v330 = vsel %vm322, %v293, %v329
        %vm331 = vcmask 130048
        %v332 = vsel %vm331, %v323, 0
        %v334 = vsel %vm331, %v330, 0
        %336 = vmatpush.msra.mxu0 0.0
        %337 = vmatpush.msra.mxu0 0.0
        %338 = vmatpush.msra.mxu0 0.0
        %339 = vmatpush.msra.mxu0 0.0
        %340 = vmatpush.msra.mxu0 0.0
        %341 = vmatpush.msra.mxu0 0.0
        %342 = vmatpush.msra.mxu0 0.0
        %343 = vmatpush.msra.mxu0 0.0
        %344 = vmatpush.msra.mxu0 0.0
        %345 = vmatpush.msra.mxu0 0.0
        %346 = vmatpush.msra.mxu0 0.0
        %347 = vmatpush.msra.mxu0 0.0
        %348 = vmatpush.msra.mxu0 0.0
        %349 = vmatpush.msra.mxu0 0.0
        %v350 = vand.u32 %v157, 4294901760
        %351 = vmatpush.msra.mxu0 %v350
        %v352 = vand.u32 %v156, 4294901760
        %353 = vmatpush.msra.mxu0 %v352
        %v354 = vand.u32 %v332, 4294901760
        %v355 = vsub.f32 %v332, %v354
        %v356 = vand.u32 %v355, 4294901760
        %v357 = vsub.f32 %v355, %v356
        %v358 = vand.u32 %v357, 4294901760
        %359 = vmatmul.f32.gmra.mxu0 %v358
        %v360 = vpop.f32.mrf.mxu0
        %v361 = vadd.f32 0.0, %v360
        %v362 = vand.u32 %v334, 4294901760
        %v363 = vsub.f32 %v334, %v362
        %v364 = vand.u32 %v363, 4294901760
        %v365 = vsub.f32 %v363, %v364
        %v366 = vand.u32 %v365, 4294901760
        %367 = vmatmul.f32.gmra.mxu0 %v366
        %v368 = vpop.f32.mrf.mxu0
        %v369 = vadd.f32 0.0, %v368
        %370 = vdwg.mxu0
        %371 = vmatpush.msra.mxu0 0.0
        %372 = vmatpush.msra.mxu0 0.0
        %373 = vmatpush.msra.mxu0 0.0
        %374 = vmatpush.msra.mxu0 0.0
        %375 = vmatpush.msra.mxu0 0.0
        %376 = vmatpush.msra.mxu0 0.0
        %377 = vmatpush.msra.mxu0 0.0
        %378 = vmatpush.msra.mxu0 0.0
        %379 = vmatpush.msra.mxu0 0.0
        %380 = vmatpush.msra.mxu0 0.0
        %381 = vmatpush.msra.mxu0 0.0
        %382 = vmatpush.msra.mxu0 0.0
        %383 = vmatpush.msra.mxu0 0.0
        %384 = vmatpush.msra.mxu0 0.0
        %v385 = vand.u32 %v157, 4294901760
        %v386 = vsub.f32 %v157, %v385
        %v387 = vand.u32 %v386, 4294901760
        %v388 = vsub.f32 %v386, %v387
        %v389 = vand.u32 %v388, 4294901760
        %390 = vmatpush.msra.mxu0 %v389
        %v391 = vand.u32 %v156, 4294901760
        %v392 = vsub.f32 %v156, %v391
        %v393 = vand.u32 %v392, 4294901760
        %v394 = vsub.f32 %v392, %v393
        %v395 = vand.u32 %v394, 4294901760
        %396 = vmatpush.msra.mxu0 %v395
        %v397 = vand.u32 %v332, 4294901760
        %398 = vmatmul.f32.gmra.mxu0 %v397
        %v399 = vpop.f32.mrf.mxu0
        %v400 = vadd.f32 %v361, %v399
        %v401 = vand.u32 %v334, 4294901760
        %402 = vmatmul.f32.gmra.mxu0 %v401
        %v403 = vpop.f32.mrf.mxu0
        %v404 = vadd.f32 %v369, %v403
        %405 = vdwg.mxu0
        %406 = vmatpush.msra.mxu0 0.0
        %407 = vmatpush.msra.mxu0 0.0
        %408 = vmatpush.msra.mxu0 0.0
        %409 = vmatpush.msra.mxu0 0.0
        %410 = vmatpush.msra.mxu0 0.0
        %411 = vmatpush.msra.mxu0 0.0
        %412 = vmatpush.msra.mxu0 0.0
        %413 = vmatpush.msra.mxu0 0.0
        %414 = vmatpush.msra.mxu0 0.0
        %415 = vmatpush.msra.mxu0 0.0
        %416 = vmatpush.msra.mxu0 0.0
        %417 = vmatpush.msra.mxu0 0.0
        %418 = vmatpush.msra.mxu0 0.0
        %419 = vmatpush.msra.mxu0 0.0
        %v420 = vand.u32 %v157, 4294901760
        %v421 = vsub.f32 %v157, %v420
        %422 = vmatpush.msra.mxu0 %v421
        %v423 = vand.u32 %v156, 4294901760
        %v424 = vsub.f32 %v156, %v423
        %425 = vmatpush.msra.mxu0 %v424
        %v426 = vand.u32 %v332, 4294901760
        %v427 = vsub.f32 %v332, %v426
        %428 = vmatmul.f32.gmra.mxu0 %v427
        %v429 = vpop.f32.mrf.mxu0
        %v430 = vadd.f32 %v400, %v429
        %v431 = vand.u32 %v334, 4294901760
        %v432 = vsub.f32 %v334, %v431
        %433 = vmatmul.f32.gmra.mxu0 %v432
        %v434 = vpop.f32.mrf.mxu0
        %v435 = vadd.f32 %v404, %v434
        %436 = vdwg.mxu0
        %437 = vmatpush.msra.mxu0 0.0
        %438 = vmatpush.msra.mxu0 0.0
        %439 = vmatpush.msra.mxu0 0.0
        %440 = vmatpush.msra.mxu0 0.0
        %441 = vmatpush.msra.mxu0 0.0
        %442 = vmatpush.msra.mxu0 0.0
        %443 = vmatpush.msra.mxu0 0.0
        %444 = vmatpush.msra.mxu0 0.0
        %445 = vmatpush.msra.mxu0 0.0
        %446 = vmatpush.msra.mxu0 0.0
        %447 = vmatpush.msra.mxu0 0.0
        %448 = vmatpush.msra.mxu0 0.0
        %449 = vmatpush.msra.mxu0 0.0
        %450 = vmatpush.msra.mxu0 0.0
        %v451 = vand.u32 %v157, 4294901760
        %452 = vmatpush.msra.mxu0 %v451
        %v453 = vand.u32 %v156, 4294901760
        %454 = vmatpush.msra.mxu0 %v453
        %v455 = vand.u32 %v332, 4294901760
        %v456 = vsub.f32 %v332, %v455
        %v457 = vand.u32 %v456, 4294901760
        %458 = vmatmul.f32.gmra.mxu0 %v457
        %v459 = vpop.f32.mrf.mxu0
        %v460 = vadd.f32 %v430, %v459
        %v461 = vand.u32 %v334, 4294901760
        %v462 = vsub.f32 %v334, %v461
        %v463 = vand.u32 %v462, 4294901760
        %464 = vmatmul.f32.gmra.mxu0 %v463
        %v465 = vpop.f32.mrf.mxu0
        %v466 = vadd.f32 %v435, %v465
        %467 = vdwg.mxu0
        %468 = vmatpush.msra.mxu0 0.0
        %469 = vmatpush.msra.mxu0 0.0
        %470 = vmatpush.msra.mxu0 0.0
        %471 = vmatpush.msra.mxu0 0.0
        %472 = vmatpush.msra.mxu0 0.0
        %473 = vmatpush.msra.mxu0 0.0
        %474 = vmatpush.msra.mxu0 0.0
        %475 = vmatpush.msra.mxu0 0.0
        %476 = vmatpush.msra.mxu0 0.0
        %477 = vmatpush.msra.mxu0 0.0
        %478 = vmatpush.msra.mxu0 0.0
        %479 = vmatpush.msra.mxu0 0.0
        %480 = vmatpush.msra.mxu0 0.0
        %481 = vmatpush.msra.mxu0 0.0
        %v482 = vand.u32 %v157, 4294901760
        %v483 = vsub.f32 %v157, %v482
        %v484 = vand.u32 %v483, 4294901760
        %485 = vmatpush.msra.mxu0 %v484
        %v486 = vand.u32 %v156, 4294901760
        %v487 = vsub.f32 %v156, %v486
        %v488 = vand.u32 %v487, 4294901760
        %489 = vmatpush.msra.mxu0 %v488
        %v490 = vand.u32 %v332, 4294901760
        %491 = vmatmul.f32.gmra.mxu0 %v490
        %v492 = vpop.f32.mrf.mxu0
        %v493 = vadd.f32 %v460, %v492
        %v494 = vand.u32 %v334, 4294901760
        %495 = vmatmul.f32.gmra.mxu0 %v494
        %v496 = vpop.f32.mrf.mxu0
        %v497 = vadd.f32 %v466, %v496
        %498 = vdwg.mxu0
        %499 = vmatpush.msra.mxu0 0.0
        %500 = vmatpush.msra.mxu0 0.0
        %501 = vmatpush.msra.mxu0 0.0
        %502 = vmatpush.msra.mxu0 0.0
        %503 = vmatpush.msra.mxu0 0.0
        %504 = vmatpush.msra.mxu0 0.0
        %505 = vmatpush.msra.mxu0 0.0
        %506 = vmatpush.msra.mxu0 0.0
        %507 = vmatpush.msra.mxu0 0.0
        %508 = vmatpush.msra.mxu0 0.0
        %509 = vmatpush.msra.mxu0 0.0
        %510 = vmatpush.msra.mxu0 0.0
        %511 = vmatpush.msra.mxu0 0.0
        %512 = vmatpush.msra.mxu0 0.0
        %v513 = vand.u32 %v157, 4294901760
        %514 = vmatpush.msra.mxu0 %v513
        %v515 = vand.u32 %v156, 4294901760
        %516 = vmatpush.msra.mxu0 %v515
        %v517 = vand.u32 %v332, 4294901760
        %518 = vmatmul.f32.gmra.mxu0 %v517
        %v519 = vpop.f32.mrf.mxu0
        %v520 = vadd.f32 %v493, %v519
        %v521 = vand.u32 %v334, 4294901760
        %522 = vmatmul.f32.gmra.mxu0 %v521
        %v523 = vpop.f32.mrf.mxu0
        %v524 = vadd.f32 %v497, %v523
        %525 = vdwg.mxu0
        %v526 = vmul.f32 %v520, 0.0625
        %v527 = vmul.f32 %v524, 0.0625
        %vm528 = vcmask 31744
        %v530 = vsel %vm528, %v526, 0
        %v533 = vsel %vm528, %v527, 0
        %vm535 = vcmask 1043456
        %v537 = vsel %vm535, %v164, 0
        %539 = vmatpush.msra.mxu0 0.0
        %540 = vmatpush.msra.mxu0 0.0
        %541 = vmatpush.msra.mxu0 0.0
        %542 = vmatpush.msra.mxu0 0.0
        %543 = vmatpush.msra.mxu0 0.0
        %544 = vmatpush.msra.mxu0 0.0
        %545 = vmatpush.msra.mxu0 0.0
        %546 = vmatpush.msra.mxu0 0.0
        %547 = vmatpush.msra.mxu0 0.0
        %548 = vmatpush.msra.mxu0 0.0
        %549 = vmatpush.msra.mxu0 0.0
        %550 = vmatpush.msra.mxu0 0.0
        %551 = vmatpush.msra.mxu0 0.0
        %552 = vmatpush.msra.mxu0 0.0
        %553 = vmatpush.msra.mxu0 0.0
        %v554 = vand.u32 %v537, 4294901760
        %555 = vmatpush.msra.mxu0 %v554
        %v556 = vand.u32 %v530, 4294901760
        %v557 = vsub.f32 %v530, %v556
        %v558 = vand.u32 %v557, 4294901760
        %v559 = vsub.f32 %v557, %v558
        %v560 = vand.u32 %v559, 4294901760
        %561 = vmatmul.f32.gmra.mxu0 %v560
        %v562 = vpop.f32.mrf.mxu0
        %v563 = vadd.f32 0.0, %v562
        %v564 = vand.u32 %v533, 4294901760
        %v565 = vsub.f32 %v533, %v564
        %v566 = vand.u32 %v565, 4294901760
        %v567 = vsub.f32 %v565, %v566
        %v568 = vand.u32 %v567, 4294901760
        %569 = vmatmul.f32.gmra.mxu0 %v568
        %v570 = vpop.f32.mrf.mxu0
        %v571 = vadd.f32 0.0, %v570
        %572 = vdwg.mxu0
        %573 = vmatpush.msra.mxu0 0.0
        %574 = vmatpush.msra.mxu0 0.0
        %575 = vmatpush.msra.mxu0 0.0
        %576 = vmatpush.msra.mxu0 0.0
        %577 = vmatpush.msra.mxu0 0.0
        %578 = vmatpush.msra.mxu0 0.0
        %579 = vmatpush.msra.mxu0 0.0
        %580 = vmatpush.msra.mxu0 0.0
        %581 = vmatpush.msra.mxu0 0.0
        %582 = vmatpush.msra.mxu0 0.0
        %583 = vmatpush.msra.mxu0 0.0
        %584 = vmatpush.msra.mxu0 0.0
        %585 = vmatpush.msra.mxu0 0.0
        %586 = vmatpush.msra.mxu0 0.0
        %587 = vmatpush.msra.mxu0 0.0
        %v588 = vand.u32 %v537, 4294901760
        %v589 = vsub.f32 %v537, %v588
        %v590 = vand.u32 %v589, 4294901760
        %v591 = vsub.f32 %v589, %v590
        %v592 = vand.u32 %v591, 4294901760
        %593 = vmatpush.msra.mxu0 %v592
        %v594 = vand.u32 %v530, 4294901760
        %595 = vmatmul.f32.gmra.mxu0 %v594
        %v596 = vpop.f32.mrf.mxu0
        %v597 = vadd.f32 %v563, %v596
        %v598 = vand.u32 %v533, 4294901760
        %599 = vmatmul.f32.gmra.mxu0 %v598
        %v600 = vpop.f32.mrf.mxu0
        %v601 = vadd.f32 %v571, %v600
        %602 = vdwg.mxu0
        %603 = vmatpush.msra.mxu0 0.0
        %604 = vmatpush.msra.mxu0 0.0
        %605 = vmatpush.msra.mxu0 0.0
        %606 = vmatpush.msra.mxu0 0.0
        %607 = vmatpush.msra.mxu0 0.0
        %608 = vmatpush.msra.mxu0 0.0
        %609 = vmatpush.msra.mxu0 0.0
        %610 = vmatpush.msra.mxu0 0.0
        %611 = vmatpush.msra.mxu0 0.0
        %612 = vmatpush.msra.mxu0 0.0
        %613 = vmatpush.msra.mxu0 0.0
        %614 = vmatpush.msra.mxu0 0.0
        %615 = vmatpush.msra.mxu0 0.0
        %616 = vmatpush.msra.mxu0 0.0
        %617 = vmatpush.msra.mxu0 0.0
        %v618 = vand.u32 %v537, 4294901760
        %v619 = vsub.f32 %v537, %v618
        %620 = vmatpush.msra.mxu0 %v619
        %v621 = vand.u32 %v530, 4294901760
        %v622 = vsub.f32 %v530, %v621
        %623 = vmatmul.f32.gmra.mxu0 %v622
        %v624 = vpop.f32.mrf.mxu0
        %v625 = vadd.f32 %v597, %v624
        %v626 = vand.u32 %v533, 4294901760
        %v627 = vsub.f32 %v533, %v626
        %628 = vmatmul.f32.gmra.mxu0 %v627
        %v629 = vpop.f32.mrf.mxu0
        %v630 = vadd.f32 %v601, %v629
        %631 = vdwg.mxu0
        %632 = vmatpush.msra.mxu0 0.0
        %633 = vmatpush.msra.mxu0 0.0
        %634 = vmatpush.msra.mxu0 0.0
        %635 = vmatpush.msra.mxu0 0.0
        %636 = vmatpush.msra.mxu0 0.0
        %637 = vmatpush.msra.mxu0 0.0
        %638 = vmatpush.msra.mxu0 0.0
        %639 = vmatpush.msra.mxu0 0.0
        %640 = vmatpush.msra.mxu0 0.0
        %641 = vmatpush.msra.mxu0 0.0
        %642 = vmatpush.msra.mxu0 0.0
        %643 = vmatpush.msra.mxu0 0.0
        %644 = vmatpush.msra.mxu0 0.0
        %645 = vmatpush.msra.mxu0 0.0
        %646 = vmatpush.msra.mxu0 0.0
        %v647 = vand.u32 %v537, 4294901760
        %648 = vmatpush.msra.mxu0 %v647
        %v649 = vand.u32 %v530, 4294901760
        %v650 = vsub.f32 %v530, %v649
        %v651 = vand.u32 %v650, 4294901760
        %652 = vmatmul.f32.gmra.mxu0 %v651
        %v653 = vpop.f32.mrf.mxu0
        %v654 = vadd.f32 %v625, %v653
        %v655 = vand.u32 %v533, 4294901760
        %v656 = vsub.f32 %v533, %v655
        %v657 = vand.u32 %v656, 4294901760
        %658 = vmatmul.f32.gmra.mxu0 %v657
        %v659 = vpop.f32.mrf.mxu0
        %v660 = vadd.f32 %v630, %v659
        %661 = vdwg.mxu0
        %662 = vmatpush.msra.mxu0 0.0
        %663 = vmatpush.msra.mxu0 0.0
        %664 = vmatpush.msra.mxu0 0.0
        %665 = vmatpush.msra.mxu0 0.0
        %666 = vmatpush.msra.mxu0 0.0
        %667 = vmatpush.msra.mxu0 0.0
        %668 = vmatpush.msra.mxu0 0.0
        %669 = vmatpush.msra.mxu0 0.0
        %670 = vmatpush.msra.mxu0 0.0
        %671 = vmatpush.msra.mxu0 0.0
        %672 = vmatpush.msra.mxu0 0.0
        %673 = vmatpush.msra.mxu0 0.0
        %674 = vmatpush.msra.mxu0 0.0
        %675 = vmatpush.msra.mxu0 0.0
        %676 = vmatpush.msra.mxu0 0.0
        %v677 = vand.u32 %v537, 4294901760
        %v678 = vsub.f32 %v537, %v677
        %v679 = vand.u32 %v678, 4294901760
        %680 = vmatpush.msra.mxu0 %v679
        %v681 = vand.u32 %v530, 4294901760
        %682 = vmatmul.f32.gmra.mxu0 %v681
        %v683 = vpop.f32.mrf.mxu0
        %v684 = vadd.f32 %v654, %v683
        %v685 = vand.u32 %v533, 4294901760
        %686 = vmatmul.f32.gmra.mxu0 %v685
        %v687 = vpop.f32.mrf.mxu0
        %v688 = vadd.f32 %v660, %v687
        %689 = vdwg.mxu0
        %690 = vmatpush.msra.mxu0 0.0
        %691 = vmatpush.msra.mxu0 0.0
        %692 = vmatpush.msra.mxu0 0.0
        %693 = vmatpush.msra.mxu0 0.0
        %694 = vmatpush.msra.mxu0 0.0
        %695 = vmatpush.msra.mxu0 0.0
        %696 = vmatpush.msra.mxu0 0.0
        %697 = vmatpush.msra.mxu0 0.0
        %698 = vmatpush.msra.mxu0 0.0
        %699 = vmatpush.msra.mxu0 0.0
        %700 = vmatpush.msra.mxu0 0.0
        %701 = vmatpush.msra.mxu0 0.0
        %702 = vmatpush.msra.mxu0 0.0
        %703 = vmatpush.msra.mxu0 0.0
        %704 = vmatpush.msra.mxu0 0.0
        %v705 = vand.u32 %v537, 4294901760
        %706 = vmatpush.msra.mxu0 %v705
        %v707 = vand.u32 %v530, 4294901760
        %708 = vmatmul.f32.gmra.mxu0 %v707
        %v709 = vpop.f32.mrf.mxu0
        %v710 = vadd.f32 %v684, %v709
        %v711 = vand.u32 %v533, 4294901760
        %712 = vmatmul.f32.gmra.mxu0 %v711
        %v713 = vpop.f32.mrf.mxu0
        %v714 = vadd.f32 %v688, %v713
        %715 = vdwg.mxu0
        %v718 = vrot.slane %v710, 1
        %v719 = vrot.slane %v710, 2
        %v720 = vrot.slane %v710, 3
        %v721 = vrot.slane %v710, 4
        %v722 = vrot.slane %v710, 5
        %v723 = vrot.slane %v710, 6
        %v724 = vrot.slane %v710, 7
        %v725 = vrot.slane %v714, 1
        %v726 = vrot.slane %v714, 2
        %v727 = vrot.slane %v714, 3
        %v728 = vrot.slane %v714, 4
        %v729 = vrot.slane %v714, 5
        %v730 = vrot.slane %v714, 6
        %v731 = vrot.slane %v714, 7
        %v732 = vperm.slane %v710, 0
        %v733 = vperm.slane %v718, 0
        %v734 = vperm.slane %v719, 0
        %v735 = vperm.slane %v720, 0
        %v736 = vperm.slane %v721, 0
        %v737 = vperm.slane %v722, 0
        %v738 = vperm.slane %v723, 0
        %v739 = vperm.slane %v724, 0
        %v740 = vperm.slane %v714, 0
        %v741 = vperm.slane %v725, 0
        %v742 = vperm.slane %v726, 0
        %v743 = vperm.slane %v727, 0
        %v744 = vperm.slane %v728, 0
        %v745 = vperm.slane %v729, 0
        %v746 = vperm.slane %v730, 0
        %v747 = vperm.slane %v731, 0
        %v764 = vsub.f32 %v165, %v732
        %v765 = vsub.f32 %v166, %v733
        %v766 = vsub.f32 %v167, %v734
        %v767 = vsub.f32 %v168, %v735
        %v768 = vsub.f32 %v169, %v736
        %v769 = vsub.f32 %v170, %v737
        %v770 = vsub.f32 %v171, %v738
        %v771 = vsub.f32 %v172, %v739
        %v772 = vsub.f32 %v173, %v740
        %v773 = vsub.f32 %v174, %v741
        %v774 = vsub.f32 %v175, %v742
        %v775 = vsub.f32 %v176, %v743
        %v776 = vsub.f32 %v177, %v744
        %v777 = vsub.f32 %v178, %v745
        %v778 = vsub.f32 %v179, %v746
        %v779 = vsub.f32 %v180, %v747
        %v780 = vmul.f32 %v764, %v764
        %v781 = vmul.f32 %v765, %v765
        %v782 = vmul.f32 %v766, %v766
        %v783 = vmul.f32 %v767, %v767
        %v784 = vmul.f32 %v768, %v768
        %v785 = vmul.f32 %v769, %v769
        %v786 = vmul.f32 %v770, %v770
        %v787 = vmul.f32 %v771, %v771
        %v788 = vmul.f32 %v772, %v772
        %v789 = vmul.f32 %v773, %v773
        %v790 = vmul.f32 %v774, %v774
        %v791 = vmul.f32 %v775, %v775
        %v792 = vmul.f32 %v776, %v776
        %v793 = vmul.f32 %v777, %v777
        %v794 = vmul.f32 %v778, %v778
        %v795 = vmul.f32 %v779, %v779
        %v796 = vsel %vm181, %v780, 0.0
        %v797 = vrot.slane %v796, 4
        %v798 = vadd.f32 %v796, %v797
        %v799 = vrot.slane %v798, 2
        %v800 = vadd.f32 %v798, %v799
        %v801 = vrot.slane %v800, 1
        %v802 = vadd.f32 %v800, %v801
        %v803 = vsel %vm181, %v781, 0.0
        %v804 = vrot.slane %v803, 4
        %v805 = vadd.f32 %v803, %v804
        %v806 = vrot.slane %v805, 2
        %v807 = vadd.f32 %v805, %v806
        %v808 = vrot.slane %v807, 1
        %v809 = vadd.f32 %v807, %v808
        %v810 = vsel %vm181, %v782, 0.0
        %v811 = vrot.slane %v810, 4
        %v812 = vadd.f32 %v810, %v811
        %v813 = vrot.slane %v812, 2
        %v814 = vadd.f32 %v812, %v813
        %v815 = vrot.slane %v814, 1
        %v816 = vadd.f32 %v814, %v815
        %v817 = vsel %vm181, %v783, 0.0
        %v818 = vrot.slane %v817, 4
        %v819 = vadd.f32 %v817, %v818
        %v820 = vrot.slane %v819, 2
        %v821 = vadd.f32 %v819, %v820
        %v822 = vrot.slane %v821, 1
        %v823 = vadd.f32 %v821, %v822
        %v824 = vsel %vm181, %v784, 0.0
        %v825 = vrot.slane %v824, 4
        %v826 = vadd.f32 %v824, %v825
        %v827 = vrot.slane %v826, 2
        %v828 = vadd.f32 %v826, %v827
        %v829 = vrot.slane %v828, 1
        %v830 = vadd.f32 %v828, %v829
        %v831 = vsel %vm181, %v785, 0.0
        %v832 = vrot.slane %v831, 4
        %v833 = vadd.f32 %v831, %v832
        %v834 = vrot.slane %v833, 2
        %v835 = vadd.f32 %v833, %v834
        %v836 = vrot.slane %v835, 1
        %v837 = vadd.f32 %v835, %v836
        %v838 = vsel %vm181, %v786, 0.0
        %v839 = vrot.slane %v838, 4
        %v840 = vadd.f32 %v838, %v839
        %v841 = vrot.slane %v840, 2
        %v842 = vadd.f32 %v840, %v841
        %v843 = vrot.slane %v842, 1
        %v844 = vadd.f32 %v842, %v843
        %v845 = vsel %vm181, %v787, 0.0
        %v846 = vrot.slane %v845, 4
        %v847 = vadd.f32 %v845, %v846
        %v848 = vrot.slane %v847, 2
        %v849 = vadd.f32 %v847, %v848
        %v850 = vrot.slane %v849, 1
        %v851 = vadd.f32 %v849, %v850
        %v852 = vsel %vm181, %v788, 0.0
        %v853 = vrot.slane %v852, 4
        %v854 = vadd.f32 %v852, %v853
        %v855 = vrot.slane %v854, 2
        %v856 = vadd.f32 %v854, %v855
        %v857 = vrot.slane %v856, 1
        %v858 = vadd.f32 %v856, %v857
        %v859 = vsel %vm181, %v789, 0.0
        %v860 = vrot.slane %v859, 4
        %v861 = vadd.f32 %v859, %v860
        %v862 = vrot.slane %v861, 2
        %v863 = vadd.f32 %v861, %v862
        %v864 = vrot.slane %v863, 1
        %v865 = vadd.f32 %v863, %v864
        %v866 = vsel %vm181, %v790, 0.0
        %v867 = vrot.slane %v866, 4
        %v868 = vadd.f32 %v866, %v867
        %v869 = vrot.slane %v868, 2
        %v870 = vadd.f32 %v868, %v869
        %v871 = vrot.slane %v870, 1
        %v872 = vadd.f32 %v870, %v871
        %v873 = vsel %vm181, %v791, 0.0
        %v874 = vrot.slane %v873, 4
        %v875 = vadd.f32 %v873, %v874
        %v876 = vrot.slane %v875, 2
        %v877 = vadd.f32 %v875, %v876
        %v878 = vrot.slane %v877, 1
        %v879 = vadd.f32 %v877, %v878
        %v880 = vsel %vm181, %v792, 0.0
        %v881 = vrot.slane %v880, 4
        %v882 = vadd.f32 %v880, %v881
        %v883 = vrot.slane %v882, 2
        %v884 = vadd.f32 %v882, %v883
        %v885 = vrot.slane %v884, 1
        %v886 = vadd.f32 %v884, %v885
        %v887 = vsel %vm181, %v793, 0.0
        %v888 = vrot.slane %v887, 4
        %v889 = vadd.f32 %v887, %v888
        %v890 = vrot.slane %v889, 2
        %v891 = vadd.f32 %v889, %v890
        %v892 = vrot.slane %v891, 1
        %v893 = vadd.f32 %v891, %v892
        %v894 = vsel %vm181, %v794, 0.0
        %v895 = vrot.slane %v894, 4
        %v896 = vadd.f32 %v894, %v895
        %v897 = vrot.slane %v896, 2
        %v898 = vadd.f32 %v896, %v897
        %v899 = vrot.slane %v898, 1
        %v900 = vadd.f32 %v898, %v899
        %v901 = vsel %vm181, %v795, 0.0
        %v902 = vrot.slane %v901, 4
        %v903 = vadd.f32 %v901, %v902
        %v904 = vrot.slane %v903, 2
        %v905 = vadd.f32 %v903, %v904
        %v906 = vrot.slane %v905, 1
        %v907 = vadd.f32 %v905, %v906
        %v924 = vsel %vm310, %v809, %v802
        %v925 = vsel %vm312, %v816, %v924
        %v926 = vsel %vm314, %v823, %v925
        %v927 = vsel %vm316, %v830, %v926
        %v928 = vsel %vm318, %v837, %v927
        %v929 = vsel %vm320, %v844, %v928
        %v930 = vsel %vm322, %v851, %v929
        %v931 = vsel %vm310, %v865, %v858
        %v932 = vsel %vm312, %v872, %v931
        %v933 = vsel %vm314, %v879, %v932
        %v934 = vsel %vm316, %v886, %v933
        %v935 = vsel %vm318, %v893, %v934
        %v936 = vsel %vm320, %v900, %v935
        %v937 = vsel %vm322, %v907, %v936
        %v938 = vsel %vm331, %v930, 0
        %v940 = vsel %vm331, %v937, 0
        %942 = vmatpush.msra.mxu0 0.0
        %943 = vmatpush.msra.mxu0 0.0
        %944 = vmatpush.msra.mxu0 0.0
        %945 = vmatpush.msra.mxu0 0.0
        %946 = vmatpush.msra.mxu0 0.0
        %947 = vmatpush.msra.mxu0 0.0
        %948 = vmatpush.msra.mxu0 0.0
        %949 = vmatpush.msra.mxu0 0.0
        %950 = vmatpush.msra.mxu0 0.0
        %951 = vmatpush.msra.mxu0 0.0
        %952 = vmatpush.msra.mxu0 0.0
        %953 = vmatpush.msra.mxu0 0.0
        %954 = vmatpush.msra.mxu0 0.0
        %955 = vmatpush.msra.mxu0 0.0
        %v956 = vand.u32 %v157, 4294901760
        %957 = vmatpush.msra.mxu0 %v956
        %v958 = vand.u32 %v156, 4294901760
        %959 = vmatpush.msra.mxu0 %v958
        %v960 = vand.u32 %v938, 4294901760
        %v961 = vsub.f32 %v938, %v960
        %v962 = vand.u32 %v961, 4294901760
        %v963 = vsub.f32 %v961, %v962
        %v964 = vand.u32 %v963, 4294901760
        %965 = vmatmul.f32.gmra.mxu0 %v964
        %v966 = vpop.f32.mrf.mxu0
        %v967 = vadd.f32 0.0, %v966
        %v968 = vand.u32 %v940, 4294901760
        %v969 = vsub.f32 %v940, %v968
        %v970 = vand.u32 %v969, 4294901760
        %v971 = vsub.f32 %v969, %v970
        %v972 = vand.u32 %v971, 4294901760
        %973 = vmatmul.f32.gmra.mxu0 %v972
        %v974 = vpop.f32.mrf.mxu0
        %v975 = vadd.f32 0.0, %v974
        %976 = vdwg.mxu0
        %977 = vmatpush.msra.mxu0 0.0
        %978 = vmatpush.msra.mxu0 0.0
        %979 = vmatpush.msra.mxu0 0.0
        %980 = vmatpush.msra.mxu0 0.0
        %981 = vmatpush.msra.mxu0 0.0
        %982 = vmatpush.msra.mxu0 0.0
        %983 = vmatpush.msra.mxu0 0.0
        %984 = vmatpush.msra.mxu0 0.0
        %985 = vmatpush.msra.mxu0 0.0
        %986 = vmatpush.msra.mxu0 0.0
        %987 = vmatpush.msra.mxu0 0.0
        %988 = vmatpush.msra.mxu0 0.0
        %989 = vmatpush.msra.mxu0 0.0
        %990 = vmatpush.msra.mxu0 0.0
        %v991 = vand.u32 %v157, 4294901760
        %v992 = vsub.f32 %v157, %v991
        %v993 = vand.u32 %v992, 4294901760
        %v994 = vsub.f32 %v992, %v993
        %v995 = vand.u32 %v994, 4294901760
        %996 = vmatpush.msra.mxu0 %v995
        %v997 = vand.u32 %v156, 4294901760
        %v998 = vsub.f32 %v156, %v997
        %v999 = vand.u32 %v998, 4294901760
        %v1000 = vsub.f32 %v998, %v999
        %v1001 = vand.u32 %v1000, 4294901760
        %1002 = vmatpush.msra.mxu0 %v1001
        %v1003 = vand.u32 %v938, 4294901760
        %1004 = vmatmul.f32.gmra.mxu0 %v1003
        %v1005 = vpop.f32.mrf.mxu0
        %v1006 = vadd.f32 %v967, %v1005
        %v1007 = vand.u32 %v940, 4294901760
        %1008 = vmatmul.f32.gmra.mxu0 %v1007
        %v1009 = vpop.f32.mrf.mxu0
        %v1010 = vadd.f32 %v975, %v1009
        %1011 = vdwg.mxu0
        %1012 = vmatpush.msra.mxu0 0.0
        %1013 = vmatpush.msra.mxu0 0.0
        %1014 = vmatpush.msra.mxu0 0.0
        %1015 = vmatpush.msra.mxu0 0.0
        %1016 = vmatpush.msra.mxu0 0.0
        %1017 = vmatpush.msra.mxu0 0.0
        %1018 = vmatpush.msra.mxu0 0.0
        %1019 = vmatpush.msra.mxu0 0.0
        %1020 = vmatpush.msra.mxu0 0.0
        %1021 = vmatpush.msra.mxu0 0.0
        %1022 = vmatpush.msra.mxu0 0.0
        %1023 = vmatpush.msra.mxu0 0.0
        %1024 = vmatpush.msra.mxu0 0.0
        %1025 = vmatpush.msra.mxu0 0.0
        %v1026 = vand.u32 %v157, 4294901760
        %v1027 = vsub.f32 %v157, %v1026
        %1028 = vmatpush.msra.mxu0 %v1027
        %v1029 = vand.u32 %v156, 4294901760
        %v1030 = vsub.f32 %v156, %v1029
        %1031 = vmatpush.msra.mxu0 %v1030
        %v1032 = vand.u32 %v938, 4294901760
        %v1033 = vsub.f32 %v938, %v1032
        %1034 = vmatmul.f32.gmra.mxu0 %v1033
        %v1035 = vpop.f32.mrf.mxu0
        %v1036 = vadd.f32 %v1006, %v1035
        %v1037 = vand.u32 %v940, 4294901760
        %v1038 = vsub.f32 %v940, %v1037
        %1039 = vmatmul.f32.gmra.mxu0 %v1038
        %v1040 = vpop.f32.mrf.mxu0
        %v1041 = vadd.f32 %v1010, %v1040
        %1042 = vdwg.mxu0
        %1043 = vmatpush.msra.mxu0 0.0
        %1044 = vmatpush.msra.mxu0 0.0
        %1045 = vmatpush.msra.mxu0 0.0
        %1046 = vmatpush.msra.mxu0 0.0
        %1047 = vmatpush.msra.mxu0 0.0
        %1048 = vmatpush.msra.mxu0 0.0
        %1049 = vmatpush.msra.mxu0 0.0
        %1050 = vmatpush.msra.mxu0 0.0
        %1051 = vmatpush.msra.mxu0 0.0
        %1052 = vmatpush.msra.mxu0 0.0
        %1053 = vmatpush.msra.mxu0 0.0
        %1054 = vmatpush.msra.mxu0 0.0
        %1055 = vmatpush.msra.mxu0 0.0
        %1056 = vmatpush.msra.mxu0 0.0
        %v1057 = vand.u32 %v157, 4294901760
        %1058 = vmatpush.msra.mxu0 %v1057
        %v1059 = vand.u32 %v156, 4294901760
        %1060 = vmatpush.msra.mxu0 %v1059
        %v1061 = vand.u32 %v938, 4294901760
        %v1062 = vsub.f32 %v938, %v1061
        %v1063 = vand.u32 %v1062, 4294901760
        %1064 = vmatmul.f32.gmra.mxu0 %v1063
        %v1065 = vpop.f32.mrf.mxu0
        %v1066 = vadd.f32 %v1036, %v1065
        %v1067 = vand.u32 %v940, 4294901760
        %v1068 = vsub.f32 %v940, %v1067
        %v1069 = vand.u32 %v1068, 4294901760
        %1070 = vmatmul.f32.gmra.mxu0 %v1069
        %v1071 = vpop.f32.mrf.mxu0
        %v1072 = vadd.f32 %v1041, %v1071
        %1073 = vdwg.mxu0
        %1074 = vmatpush.msra.mxu0 0.0
        %1075 = vmatpush.msra.mxu0 0.0
        %1076 = vmatpush.msra.mxu0 0.0
        %1077 = vmatpush.msra.mxu0 0.0
        %1078 = vmatpush.msra.mxu0 0.0
        %1079 = vmatpush.msra.mxu0 0.0
        %1080 = vmatpush.msra.mxu0 0.0
        %1081 = vmatpush.msra.mxu0 0.0
        %1082 = vmatpush.msra.mxu0 0.0
        %1083 = vmatpush.msra.mxu0 0.0
        %1084 = vmatpush.msra.mxu0 0.0
        %1085 = vmatpush.msra.mxu0 0.0
        %1086 = vmatpush.msra.mxu0 0.0
        %1087 = vmatpush.msra.mxu0 0.0
        %v1088 = vand.u32 %v157, 4294901760
        %v1089 = vsub.f32 %v157, %v1088
        %v1090 = vand.u32 %v1089, 4294901760
        %1091 = vmatpush.msra.mxu0 %v1090
        %v1092 = vand.u32 %v156, 4294901760
        %v1093 = vsub.f32 %v156, %v1092
        %v1094 = vand.u32 %v1093, 4294901760
        %1095 = vmatpush.msra.mxu0 %v1094
        %v1096 = vand.u32 %v938, 4294901760
        %1097 = vmatmul.f32.gmra.mxu0 %v1096
        %v1098 = vpop.f32.mrf.mxu0
        %v1099 = vadd.f32 %v1066, %v1098
        %v1100 = vand.u32 %v940, 4294901760
        %1101 = vmatmul.f32.gmra.mxu0 %v1100
        %v1102 = vpop.f32.mrf.mxu0
        %v1103 = vadd.f32 %v1072, %v1102
        %1104 = vdwg.mxu0
        %1105 = vmatpush.msra.mxu0 0.0
        %1106 = vmatpush.msra.mxu0 0.0
        %1107 = vmatpush.msra.mxu0 0.0
        %1108 = vmatpush.msra.mxu0 0.0
        %1109 = vmatpush.msra.mxu0 0.0
        %1110 = vmatpush.msra.mxu0 0.0
        %1111 = vmatpush.msra.mxu0 0.0
        %1112 = vmatpush.msra.mxu0 0.0
        %1113 = vmatpush.msra.mxu0 0.0
        %1114 = vmatpush.msra.mxu0 0.0
        %1115 = vmatpush.msra.mxu0 0.0
        %1116 = vmatpush.msra.mxu0 0.0
        %1117 = vmatpush.msra.mxu0 0.0
        %1118 = vmatpush.msra.mxu0 0.0
        %v1119 = vand.u32 %v157, 4294901760
        %1120 = vmatpush.msra.mxu0 %v1119
        %v1121 = vand.u32 %v156, 4294901760
        %1122 = vmatpush.msra.mxu0 %v1121
        %v1123 = vand.u32 %v938, 4294901760
        %1124 = vmatmul.f32.gmra.mxu0 %v1123
        %v1125 = vpop.f32.mrf.mxu0
        %v1126 = vadd.f32 %v1099, %v1125
        %v1127 = vand.u32 %v940, 4294901760
        %1128 = vmatmul.f32.gmra.mxu0 %v1127
        %v1129 = vpop.f32.mrf.mxu0
        %v1130 = vadd.f32 %v1103, %v1129
        %1131 = vdwg.mxu0
        %v1132 = vmul.f32 %v1126, 0.0625
        %v1133 = vmul.f32 %v1130, 0.0625
        %1134 = vst.msk [vmem:[%s139] sm:$0xff] %vm528, %v1132
        %1135 = vst.msk [vmem:[%s139 + $0x8] sm:$0xff] %vm528, %v1133
        %s1136 = smul.u32 2, %s15
        %p1137 = scmp.lt.s32.totalorder %s1136, 3
        %s1138 = scalar_select %p1137, %s1136, 3
        %s1139 = smul.addr %s1138, 8
        %s1140 = scalar_lea.vmem %s1, %s1139
        // Predicated region
        $region29: #{stationary_loss.2} parent=23 // pred_check
          %p1141 = pneg %p59
        $region30: #{stationary_loss.2} parent=23 // pred_check_branch
          %1143 = sbr.rel (%p1141) target = $region32
        $region31: #{stationary_loss.2} parent=23 // pred_region
          %s1144 = smul.u32 2, %s15
        $region32: #{stationary_loss.2} parent=23 // pred_fallthru
          _
      $region24: #{stationary_loss.2} parent=5 // pred_fallthru
        _
      %p1145 = scmp.le.s32.totalorder 2, %s10
      // Predicated region
      $region33: #{stationary_loss.2} parent=5 // pred_check
        %p1146 = pneg %p1145
      $region34: #{stationary_loss.2} parent=5 // pred_check_branch
        %1148 = sbr.rel (%p1146) target = $region36
      $region35: #{stationary_loss.2} parent=5 // pred_region
        %s1149 = ssub.s32 %s10, 2
        // Predicated region
        $region37: #{stationary_loss.2} parent=35 // pred_check
          %p1150 = pneg %p65
        $region38: #{stationary_loss.2} parent=35 // pred_check_branch
          %1152 = sbr.rel (%p1150) target = $region40
        $region39: #{stationary_loss.2} parent=35 // pred_region
          %s1153 = smul.u32 2, %s16
          %p1154 = scmp.lt.s32.totalorder %s1153, 3
          %s1155 = scalar_select %p1154, %s1153, 3
          %s1156 = smul.addr %s1155, 8
          %s1157 = scalar_lea.vmem %s1, %s1156
        $region40: #{stationary_loss.2} parent=35 // pred_fallthru
          _
      $region36: #{stationary_loss.2} parent=5 // pred_fallthru
        _
    $region6: #{stationary_loss.2} parent=1 // loop_footer
      %s14 = sadd.s32 1, %s10
    $region7: #{stationary_loss.2} parent=1 // loop_footer_branch
      %9 = sbr.rel target = $region3
    $region8: #{stationary_loss.2} parent=1 // loop_exit
      _
    %1158 = vsyncpa [#allocation3], 1
    %s1159 = scalar_lea.sflag [#allocation3], 1
    %1160 = vsyncpa %s1159, 1

</llo_original>
